<compile_context>
chip_gen: v7x
topology: tpu7x:2x2x1
jax: 0.10.0
libtpu: 0.0.40
codegen_flags: <defaults>
</compile_context>

<pallas_src>
import jax
import jax.numpy as jnp
from jax.experimental import pallas as pl
from jax.experimental.pallas import tpu as pltpu


# ----------------------------------------------------------------------------
# Kernels
# ----------------------------------------------------------------------------
def _identity_alias_kernel(x_hbm_ref, o_hbm_ref):
    # Output buffer aliases the input buffer (input_output_aliases={0: 0}),
    # so there is no data to move.  Touch the output ref so the (otherwise
    # empty) body is not DCE'd and the alias is materialized.
    del x_hbm_ref
    pltpu.touch(o_hbm_ref)


def _identity_copy_kernel(x_hbm_ref, o_hbm_ref, copy_sem):
    # Fallback: one direct HBM -> HBM DMA.  No VMEM round trip, no vld/vst.
    cp = pltpu.make_async_copy(x_hbm_ref, o_hbm_ref, copy_sem)
    cp.start()
    cp.wait()


# ----------------------------------------------------------------------------
# pallas_call wrappers
# ----------------------------------------------------------------------------
def _alias_call(x: jax.Array) -> jax.Array:
    return pl.pallas_call(
        _identity_alias_kernel,
        out_shape=jax.ShapeDtypeStruct(x.shape, x.dtype),
        # Leave both operands in their home (HBM) space: no BlockSpec tiling,
        # no VMEM staging (also sidesteps v7x's smaller 64 MiB VMEM).
        in_specs=[pl.BlockSpec(memory_space=pl.ANY)],
        out_specs=pl.BlockSpec(memory_space=pl.ANY),
        input_output_aliases={0: 0},
        compiler_params=pltpu.CompilerParams(has_side_effects=True),
        # With donation this is a metadata op: no FLOPs, no HBM traffic.
        cost_estimate=pl.CostEstimate(flops=0, transcendentals=0,
                                      bytes_accessed=0),
    )(x)


def _copy_call(x: jax.Array) -> jax.Array:
    nbytes = x.size * x.dtype.itemsize
    return pl.pallas_call(
        _identity_copy_kernel,
        out_shape=jax.ShapeDtypeStruct(x.shape, x.dtype),
        in_specs=[pl.BlockSpec(memory_space=pl.ANY)],
        out_specs=pl.BlockSpec(memory_space=pl.ANY),
        # Explicit shaped single-semaphore form (portable spelling).
        scratch_shapes=[pltpu.SemaphoreType.DMA(())],
        cost_estimate=pl.CostEstimate(flops=0, transcendentals=0,
                                      bytes_accessed=2 * nbytes),
    )(x)


# Cache whether the alias path lowers on this jax/libtpu; fall back otherwise.
_ALIAS_PATH_OK = None


def _identity_pallas(x: jax.Array) -> jax.Array:
    global _ALIAS_PATH_OK
    orig_shape = x.shape
    # Normalize 0-d scalars so the HBM refs have at least one dimension.
    x_op = x.reshape(1) if x.ndim == 0 else x

    if _ALIAS_PATH_OK is None:
        try:
            out = _alias_call(x_op)
            _ALIAS_PATH_OK = True
            return out.reshape(orig_shape)
        except Exception:
            _ALIAS_PATH_OK = False
    elif _ALIAS_PATH_OK:
        return _alias_call(x_op).reshape(orig_shape)

    # Fallback: materialized copy via a single HBM->HBM DMA.
    return _copy_call(x_op).reshape(orig_shape)


# ----------------------------------------------------------------------------
# Public identity (== nn.Identity().forward)
# ----------------------------------------------------------------------------
_SMALL_BYTES = 1 << 20  # 1 MiB: below this, kernel launch overhead dominates.


def identity(x, *, small_bytes_threshold: int = _SMALL_BYTES) -> jax.Array:
    """Pallas implementation of nn.Identity().forward(x)."""
    x = jnp.asarray(x)
    # Fast path: nn.Identity returns its input as-is; for tiny tensors a
    # pallas_call's fixed ~µs launch/DMA-setup cost would dominate by 10-100x.
    if x.size * x.dtype.itemsize < small_bytes_threshold:
        return x
    return _identity_pallas(x)


if __name__ == "__main__":
    key = jax.random.PRNGKey(0)
    # Small NCHW input consistent with a typical conv-net feature map.
    x = jax.random.normal(key, (2, 4, 16, 16), dtype=jnp.float32)

    # 1) Wrapper fast path (8 KiB input -> returned as-is).
    y_fast = jax.block_until_ready(identity(x))
    assert y_fast.shape == x.shape and y_fast.dtype == x.dtype
    assert bool(jnp.array_equal(y_fast, x)), "fast path output differs"

    # 2) Force the Pallas kernel path on the same small input.
    y = jax.block_until_ready(identity(x, small_bytes_threshold=0))
    assert y.shape == x.shape and y.dtype == x.dtype
    assert bool(jnp.array_equal(y, x)), "Identity kernel output differs"

    # 3) Narrow dtype + awkward (non-128-aligned) shape through the kernel.
    xb = jax.random.normal(jax.random.PRNGKey(1), (3, 5, 7)).astype(jnp.bfloat16)
    yb = jax.block_until_ready(identity(xb, small_bytes_threshold=0))
    assert yb.shape == xb.shape and yb.dtype == xb.dtype
    assert bool(jnp.array_equal(yb, xb)), "Identity kernel output differs (bf16)"

    # 4) jit + buffer donation: with input_output_aliases the identity is a
    #    zero-copy metadata op when the caller donates the buffer.
    big = jax.random.normal(jax.random.PRNGKey(2), (1024, 512), dtype=jnp.float32)
    expected = jax.device_get(big)  # host copy for verification (big is donated)
    donated_identity = jax.jit(identity, donate_argnums=0)
    yd = jax.block_until_ready(donated_identity(big))
    assert yd.shape == expected.shape and yd.dtype == expected.dtype
    assert bool(jnp.array_equal(yd, jnp.asarray(expected))), "donated path differs"

    print("KERNEL_OK")
</pallas_src>

<mosaic_0001>
module attributes {stable_mosaic.version = 11 : i64} {
  func.func @_identity_alias_kernel(%arg0: memref<2x4x16x16xf32, #tpu.memory_space<any>>, %arg1: memref<2x4x16x16xf32, #tpu.memory_space<any>>) attributes {dimension_semantics = [], scalar_prefetch = 0 : i64, scratch_operands = 0 : i64, tpu.core_type = #tpu.core_type<tc>} {
    return
  }
}

module attributes {stable_mosaic.version = 11 : i64} {
  func.func @_identity_copy_kernel(%arg0: memref<2x4x16x16xf32, #tpu.memory_space<any>>, %arg1: memref<2x4x16x16xf32, #tpu.memory_space<any>>, %arg2: memref<!tpu.dma_semaphore, #tpu.memory_space<semaphore_mem>>) attributes {dimension_semantics = [], scalar_prefetch = 0 : i64, scratch_operands = 1 : i64, tpu.core_type = #tpu.core_type<tc>} {
    tpu.enqueue_dma source(%arg0 : memref<2x4x16x16xf32, #tpu.memory_space<any>>) target(%arg1 : memref<2x4x16x16xf32, #tpu.memory_space<any>>) target_semaphore(%arg2 : memref<!tpu.dma_semaphore, #tpu.memory_space<semaphore_mem>>)
    tpu.wait_dma2 semaphore(%arg2 : memref<!tpu.dma_semaphore, #tpu.memory_space<semaphore_mem>>) src(%arg0 : memref<2x4x16x16xf32, #tpu.memory_space<any>>) dst(%arg1 : memref<2x4x16x16xf32, #tpu.memory_space<any>>)
    return
  }
}

</mosaic_0001>

<llo_original>
// kernel: tpu_custom_call.1
$region0: #{tpu_custom_call.1}
  #allocation0 [shape = 'u32[]', space=smem, size = 0x4, offset = 0x4, fixed_abs, tag = 'smem constant byte address 0x4 - core index']
  #allocation1 [shape = 'u32[144,128]{1,0:T(1,128)}', space=vmem, size = 0x12000, scoped, tag = 'internal scratch']
  %s0 = inlined_call_operand.hbm [shape: f32[2,4,16,16], index: 0, kind: input, shape index: {}, may-alias: {0,1}]
  %s1 = inlined_call_operand.hbm [shape: f32[2,4,16,16], index: 1, kind: output, shape index: {}, may-alias: {0,1}]
  %s2 = sld [smem:[#allocation0]]
  $region2: #{tpu_custom_call.1} parent=0
    _
  %s4 = ssub.s32 1, %s2
  %s5 = scalar_select 0, %s4, %s2

// kernel: tpu_custom_call.1
$region0: #{tpu_custom_call.1}
  #allocation0 [shape = 'u32[]', space=smem, size = 0x4, offset = 0x4, fixed_abs, tag = 'smem constant byte address 0x4 - core index']
  #allocation1 [shape = 'u32[144,128]{1,0:T(1,128)}', space=vmem, size = 0x12000, scoped, tag = 'internal scratch']
  #allocation2 [shape = 's32[1]{0}', space=sflag, size = 0x4, scoped, tag = 'scratch operand']
  #allocation3 [shape = 's32[]', space=sflag, size = 0x4, offset = 0, fixed_abs, tag = 'sflag constant byte address 0x0 - dummy sync flag']
  #allocation4 [shape = 'u32[0]{0}', space=smem, size = 0, offset = 0, fixed_abs, tag = 'smem constant byte address 0x0 - null']
  %s0 = inlined_call_operand.hbm [shape: f32[2,4,16,16], index: 0, kind: input, shape index: {}]
  %s1 = inlined_call_operand.hbm [shape: f32[2,4,16,16], index: 1, kind: output, shape index: {}]
  %s2 = sld [smem:[#allocation0]]
  $region2: #{tpu_custom_call.1} parent=0
    _
  %s4 = ssub.s32 1, %s2
  %s5 = scalar_select 0, %s4, %s2
  %s7 = sshll.u32 1, 14
  %s8 = sxor.u32 4294967295, %s7
  %s11 = sshll.u32 3, 24
  %s12 = sxor.u32 4294967295, %s11
  %s13 = sand.u32 0, %s12
  %s15 = sor.u32 %s13, 0
  %18 = dma.general %s0, 2048, %s1, [#allocation2], [#allocation3], [#allocation4], %s15, 0
  %s19 = smul.u32 2, 4
  %s20 = smul.u32 %s19, 16
  %s21 = smul.u32 %s20, 1
  %s22 = sshll.u32 %s21, 4
  %23 = dma.done [#allocation2], %s22
  %24 = vsyncmov [#allocation2]
  %s25 = vpop.sfrf %24
  %p26 = scmp.eq.s32.totalorder %s25, 0
  %p27 = pneg %p26
  %29 = shalt.err (%p27)

</llo_original>
